<compile_context>
chip_gen: v7x
topology: tpu7x:2x2x1
jax: 0.10.0
libtpu: 0.0.40
codegen_flags: <defaults>
</compile_context>

<pallas_src>
import functools

import jax
import jax.numpy as jnp
import numpy as np
from jax.experimental import pallas as pl
from jax.experimental.pallas import tpu as pltpu

EPS = 1e-07  # kept for signature parity with the PyTorch module; its forward never uses it


def _agce_kernel(n_ref, pred_ref, labels_ref, out_ref, *, a, q, tn, mask_tail):
    i = pl.program_id(0)

    x = pred_ref[...].astype(jnp.float32)                         # (C, TN)
    labels = labels_ref[...]                                      # (1, TN) int32

    if mask_tail:
        # Columns past n_valid in the (partial) last block are undefined VMEM.
        # Zero them BEFORE the exp so garbage can never become inf/NaN.
        n_valid = n_ref[0]
        col = i * tn + jax.lax.broadcasted_iota(jnp.int32, (1, tn), 1)
        valid = col < n_valid                                      # (1, TN)
        x = jnp.where(valid, x, 0.0)

    # --- softmax over the class (sublane) axis, without materializing p -----
    m = jnp.max(x, axis=0, keepdims=True)                          # (1, TN)
    e = jnp.exp(x - m)                                             # (C, TN)
    denom = jnp.sum(e, axis=0, keepdims=True)                      # (1, TN)

    # --- one-hot gather of the true-class unnormalized prob, then normalize -
    cls_idx = jax.lax.broadcasted_iota(jnp.int32, x.shape, 0)      # (C, TN)
    e_y = jnp.sum(jnp.where(cls_idx == labels, e, 0.0),
                  axis=0, keepdims=True)                           # (1, TN)
    p_y = e_y / denom                                              # exact; DMA-bound kernel

    # --- AGCE transform: ((a+1)^q - (a + p_y)^q) / q  (a >= 0 => base > 0) --
    base = a + p_y
    if q == int(q) and 1 <= int(q) <= 4:
        iq = int(q)
        pow_term = base
        for _ in range(iq - 1):
            pow_term = pow_term * base                             # exact integer power
        const = float((a + 1.0) ** iq)
    else:
        pow_term = jnp.power(base, q)
        const = float((a + 1.0) ** q)
    loss = (const - pow_term) / q                                  # (1, TN)

    if mask_tail:
        loss = jnp.where(valid, loss, 0.0)

    # --- per-tile batch sum, written to this tile's own lane-dense block ----
    out_ref[...] = jnp.broadcast_to(jnp.sum(loss), out_ref.shape)


def agce_loss(pred, labels, *, num_classes=10, a=1, q=2, eps=EPS, scale=1.0,
              tn=8192, class_major=False):
    """AGCELoss forward: scalar mean loss over the batch.

    pred: (N, C) logits, or (C, N) if class_major=True (preferred: lets the
    upstream matmul emit the batch-on-lanes layout directly).
    """
    del eps  # the reference PyTorch forward does not use it
    if class_major:
        c, n = pred.shape
    else:
        n, c = pred.shape
    assert c == num_classes

    # Batch-on-lanes layout for the kernel.
    # TODO(synk): ideally the producer emits (C, N) logits so this transpose
    # (and its HBM round trip) disappears entirely.
    pred_t = pred if class_major else pred.T                      # (C, N)
    labels_row = labels.astype(jnp.int32).reshape(1, n)           # (1, N), lane-dense

    # Lane tile: multiple of 128 (or the full batch for small N); shrink so the
    # grid has >= 8 tiles when the batch is big enough (v7x megacore + pipeline).
    tn_req = max(128, (int(tn) // 128) * 128)
    if n <= min(tn_req, 1024):
        tn_eff = n                                                # single full-width block
    else:
        per8 = ((-(-n // 8) + 127) // 128) * 128                  # cdiv(n,8) -> mult of 128
        tn_eff = max(128, min(tn_req, per8))
    grid = pl.cdiv(n, tn_eff)
    mask_tail = (n % tn_eff) != 0

    n_arr = jnp.array([n], dtype=jnp.int32)                       # scalar-prefetch arg (SMEM)
    kernel = functools.partial(_agce_kernel, a=float(a), q=float(q),
                               tn=tn_eff, mask_tail=mask_tail)

    partials = pl.pallas_call(
        kernel,
        out_shape=jax.ShapeDtypeStruct((grid, 1, 128), jnp.float32),
        grid_spec=pltpu.PrefetchScalarGridSpec(
            num_scalar_prefetch=1,
            grid=(grid,),
            in_specs=[
                pl.BlockSpec((c, tn_eff), lambda i, n_ref: (0, i)),
                pl.BlockSpec((1, tn_eff), lambda i, n_ref: (0, i)),
            ],
            out_specs=pl.BlockSpec((1, 1, 128), lambda i, n_ref: (i, 0, 0)),
        ),
        compiler_params=pltpu.CompilerParams(
            dimension_semantics=("parallel",)),
    )(n_arr, pred_t, labels_row)

    total = jnp.sum(partials[:, 0, 0])
    return (total / n) * scale


def _agce_loss_ref(pred, labels, *, num_classes=10, a=1, q=2, scale=1.0):
    p = jax.nn.softmax(pred.astype(jnp.float32), axis=1)
    oh = jax.nn.one_hot(labels, num_classes, dtype=jnp.float32)
    p_y = jnp.sum(oh * p, axis=1)
    loss = ((a + 1.0) ** q - jnp.power(a + p_y, float(q))) / q
    return jnp.mean(loss) * scale


if __name__ == "__main__":
    num_classes = 10
    key = jax.random.PRNGKey(0)
    k1, k2, k3, k4 = jax.random.split(key, 4)

    # Small single-tile case (batch not a multiple of 8 or 128).
    pred = jax.random.normal(k1, (12, num_classes), dtype=jnp.float32)
    labels = jax.random.randint(k2, (12,), 0, num_classes, dtype=jnp.int32)
    out = jax.block_until_ready(
        agce_loss(pred, labels, num_classes=num_classes, a=1, q=2, scale=1.0))
    ref = _agce_loss_ref(pred, labels, num_classes=num_classes, a=1, q=2, scale=1.0)
    np.testing.assert_allclose(np.asarray(out), np.asarray(ref),
                               rtol=1e-5, atol=1e-5)

    # Multi-tile case: parallel grid, masked partial tail (300 = 2*128 + 44).
    pred2 = jax.random.normal(k3, (300, num_classes), dtype=jnp.float32)
    labels2 = jax.random.randint(k4, (300,), 0, num_classes, dtype=jnp.int32)
    out2 = jax.block_until_ready(
        agce_loss(pred2, labels2, num_classes=num_classes, a=1, q=2, scale=1.0,
                  tn=128))
    ref2 = _agce_loss_ref(pred2, labels2, num_classes=num_classes, a=1, q=2,
                          scale=1.0)
    np.testing.assert_allclose(np.asarray(out2), np.asarray(ref2),
                               rtol=1e-5, atol=1e-5)

    # bf16 logits + non-integer q: exercises the in-kernel upcast and pow path.
    pred3 = pred2.astype(jnp.bfloat16)
    out3 = jax.block_until_ready(
        agce_loss(pred3, labels2, num_classes=num_classes, a=0.5, q=1.5,
                  scale=2.0, tn=128))
    ref3 = _agce_loss_ref(pred3, labels2, num_classes=num_classes, a=0.5, q=1.5,
                          scale=2.0)
    np.testing.assert_allclose(np.asarray(out3), np.asarray(ref3),
                               rtol=1e-3, atol=1e-4)

    print("KERNEL_OK")
</pallas_src>

<mosaic_0001>
module attributes {stable_mosaic.version = 11 : i64} {
  func.func @_agce_kernel(%arg0: i32, %arg1: memref<1xi32, #tpu.memory_space<smem>>, %arg2: memref<10x12xf32, #tpu.memory_space<vmem>>, %arg3: memref<1x12xi32, #tpu.memory_space<vmem>>, %arg4: memref<1x1x128xf32, #tpu.memory_space<vmem>>) attributes {dimension_semantics = [#tpu.dimension_semantics<parallel>], iteration_bounds = array<i64: 1>, scalar_prefetch = 1 : i64, scratch_operands = 0 : i64, tpu.core_type = #tpu.core_type<tc>, window_params = [{transform_indices = @transform_0, window_bounds = array<i64: 10, 12>}, {transform_indices = @transform_1, window_bounds = array<i64: 1, 12>}, {transform_indices = @transform_2, window_bounds = array<i64: 1, 1, 128>}]} {
    %c0 = arith.constant 0 : index
    %c0_0 = arith.constant 0 : index
    %0 = vector.load %arg2[%c0, %c0_0] : memref<10x12xf32, #tpu.memory_space<vmem>>, vector<10x12xf32>
    %c0_1 = arith.constant 0 : index
    %c0_2 = arith.constant 0 : index
    %1 = vector.load %arg3[%c0_1, %c0_2] : memref<1x12xi32, #tpu.memory_space<vmem>>, vector<1x12xi32>
    %cst = arith.constant dense<0xFF800000> : vector<12xf32>
    %2 = vector.multi_reduction <maximumf>, %0, %cst [0] : vector<10x12xf32> to vector<12xf32>
    %3 = vector.shape_cast %2 : vector<12xf32> to vector<1x12xf32>
    %4 = vector.broadcast %3 : vector<1x12xf32> to vector<10x12xf32>
    %5 = arith.subf %0, %4 : vector<10x12xf32>
    %6 = math.exp %5 : vector<10x12xf32>
    %cst_3 = arith.constant dense<0.000000e+00> : vector<12xf32>
    %7 = vector.multi_reduction <add>, %6, %cst_3 [0] : vector<10x12xf32> to vector<12xf32>
    %8 = vector.shape_cast %7 : vector<12xf32> to vector<1x12xf32>
    %9 = tpu.iota {dimensions = array<i32: 0>} : vector<10x12xi32>
    %10 = vector.broadcast %1 : vector<1x12xi32> to vector<10x12xi32>
    %11 = arith.cmpi eq, %9, %10 : vector<10x12xi32>
    %cst_4 = arith.constant 0.000000e+00 : f32
    %12 = vector.broadcast %cst_4 : f32 to vector<10x12xf32>
    %13 = arith.select %11, %6, %12 : vector<10x12xi1>, vector<10x12xf32>
    %cst_5 = arith.constant dense<0.000000e+00> : vector<12xf32>
    %14 = vector.multi_reduction <add>, %13, %cst_5 [0] : vector<10x12xf32> to vector<12xf32>
    %15 = vector.shape_cast %14 : vector<12xf32> to vector<1x12xf32>
    %16 = arith.divf %15, %8 : vector<1x12xf32>
    %cst_6 = arith.constant 1.000000e+00 : f32
    %17 = vector.broadcast %cst_6 : f32 to vector<1x12xf32>
    %18 = arith.addf %17, %16 : vector<1x12xf32>
    %19 = arith.mulf %18, %18 : vector<1x12xf32>
    %cst_7 = arith.constant 4.000000e+00 : f32
    %20 = vector.broadcast %cst_7 : f32 to vector<1x12xf32>
    %21 = arith.subf %20, %19 : vector<1x12xf32>
    %cst_8 = arith.constant 2.000000e+00 : f32
    %22 = vector.broadcast %cst_8 : f32 to vector<1x12xf32>
    %23 = arith.divf %21, %22 : vector<1x12xf32>
    %24 = vector.shape_cast %23 : vector<1x12xf32> to vector<1x1x12xf32>
    %cst_9 = arith.constant dense<0.000000e+00> : vector<1xf32>
    %25 = vector.multi_reduction <add>, %24, %cst_9 [1, 2] : vector<1x1x12xf32> to vector<1xf32>
    %26 = vector.shape_cast %25 : vector<1xf32> to vector<1x1x1xf32>
    %27 = vector.extract %26[0, 0, 0] : f32 from vector<1x1x1xf32>
    %28 = vector.broadcast %27 : f32 to vector<1x1x128xf32>
    %c0_10 = arith.constant 0 : index
    %c0_11 = arith.constant 0 : index
    %c0_12 = arith.constant 0 : index
    %29 = vector.load %arg4[%c0_10, %c0_11, %c0_12] : memref<1x1x128xf32, #tpu.memory_space<vmem>>, vector<1x1x128xf32>
    tpu.vector_store %arg4[%c0_10, %c0_11, %c0_12], %28 {strides = array<i32>} : memref<1x1x128xf32, #tpu.memory_space<vmem>>, vector<1x1x128xf32>,
    return
  }
  func.func @transform_0(%arg0: i32, %arg1: memref<1xi32, #tpu.memory_space<smem>>) -> (i32, i32) {
    %c0_i32 = arith.constant 0 : i32
    %c0_i32_0 = arith.constant 0 : i32
    return %c0_i32, %arg0 : i32, i32
  }
  func.func @transform_1(%arg0: i32, %arg1: memref<1xi32, #tpu.memory_space<smem>>) -> (i32, i32) {
    %c0_i32 = arith.constant 0 : i32
    %c0_i32_0 = arith.constant 0 : i32
    return %c0_i32, %arg0 : i32, i32
  }
  func.func @transform_2(%arg0: i32, %arg1: memref<1xi32, #tpu.memory_space<smem>>) -> (i32, i32, i32) {
    %c0_i32 = arith.constant 0 : i32
    %c0_i32_0 = arith.constant 0 : i32
    %c0_i32_1 = arith.constant 0 : i32
    return %arg0, %c0_i32, %c0_i32_0 : i32, i32, i32
  }
}

</mosaic_0001>

<llo_original>
// kernel: tpu_custom_call.1
$region0: #{tpu_custom_call.1}
  #allocation0 [shape = 'u32[]', space=smem, size = 0x4, offset = 0x4, fixed_abs, tag = 'smem constant byte address 0x4 - core index']
  #allocation1 [shape = 'u32[144,128]{1,0:T(1,128)}', space=vmem, size = 0x12000, scoped, tag = 'internal scratch']
  #allocation2 [shape = 's32[1]{0}', space=sflag, size = 0x4, scoped, tag = 'scoped memory for tpu_custom_call.1']
  #allocation3 [shape = 's32[1]{0:T(128)S(6)}', space=smem, size = 0x200, scoped, tag = 'prefetched SMEM operand 0']
  %s0 = inlined_call_operand.<no memory space> [shape: s32[1], index: 0, kind: input, shape index: {}]
  %s1 = inlined_call_operand.hbm [shape: f32[10,12], index: 1, kind: input, shape index: {}]
  %s2 = inlined_call_operand.vmem [shape: s32[1,12], index: 2, kind: input, shape index: {}]
  %s3 = inlined_call_operand.hbm [shape: f32[1,1,128], index: 3, kind: output, shape index: {}]
  %s4 = sld [smem:[#allocation0]]
  $region22: #{tpu_custom_call.1} parent=0
    _
  %s6 = ssub.s32 1, %s4
  %s7 = scalar_select 0, %s6, %s4
  %8 = sst [smem:[#allocation3]] %s0
  $region1: #{tpu_custom_call.1} parent=0
    #allocation4 [shape = 'u8[8192]{0}', space=vmem, size = 0x2000, scoped, tag = 'input window, operand 1, single buffered']
    #allocation5 [shape = 's32[1]{0}', space=sflag, size = 0x4, scoped, tag = 'scoped memory for tpu_custom_call.1']
    #allocation6 [shape = 's32[1]{0}', space=sflag, size = 0x4, scoped, tag = 'scoped memory for tpu_custom_call.1']
    #allocation7 [shape = 'u8[512]{0}', space=vmem, size = 0x400, scoped, tag = 'output window, operand 0, single buffered']
    %9 = vsyncpa [#allocation5], 0
    %10 = vsyncpa [#allocation6], 0
    // Predicated region
    $region2: #{tpu_custom_call.1} parent=1 // pred_check
      _
    $region3: #{tpu_custom_call.1} parent=1 // pred_check_branch
      %12 = sbr.rel (0) target = $region5
    $region4: #{tpu_custom_call.1} parent=1 // pred_region
      %s14 = ssub.s32 256, 256
      %15 = vsyncadd [#allocation5], %s14
      %s16 = sshll.u32 [#allocation4], 4
      %s17 = int_to_ptr.vmem [resolvable:$true] %s16
      %22 = dma.hbm_to_vmem [thread:$0]  %s1, 256, %s17, [#allocation5], 128, 128, 8
    $region5: #{tpu_custom_call.1} parent=1 // pred_fallthru
      _
    // Predicated region
    $region6: #{tpu_custom_call.1} parent=1 // pred_check
      _
    $region7: #{tpu_custom_call.1} parent=1 // pred_check_branch
      %24 = sbr.rel (0) target = $region9
    $region8: #{tpu_custom_call.1} parent=1 // pred_region
      _
    $region9: #{tpu_custom_call.1} parent=1 // pred_fallthru
      _
    // Predicated region
    $region10: #{tpu_custom_call.1} parent=1 // pred_check
      _
    $region11: #{tpu_custom_call.1} parent=1 // pred_check_branch
      %26 = sbr.rel (0) target = $region13
    $region12: #{tpu_custom_call.1} parent=1 // pred_region
      %27 = dma.done [#allocation5], 256
    $region13: #{tpu_custom_call.1} parent=1 // pred_fallthru
      _
    %v28 = vld [vmem:[#allocation4] sm:$0xff]
    %v29 = vld [vmem:[#allocation4 + $0x8] sm:$0x3]
    %v30 = vld [vmem:[%s2] sm:$0x1]
    %vm31 = vcmask 97280
    %v32 = vsel %vm31, %v28, -inf
    %vm33 = vcmask 91136
    %v34 = vsel %vm33, %v29, -inf
    %v35 = vmax.f32 %v32, %v34
    %v36 = vrot.slane %v35, 4
    %v37 = vmax.f32 %v35, %v36
    %v38 = vrot.slane %v37, 2
    %v39 = vmax.f32 %v37, %v38
    %v40 = vrot.slane %v39, 1
    %v41 = vmax.f32 %v39, %v40
    %v42 = vsub.f32 %v28, %v41
    %v43 = vsub.f32 %v29, %v41
    %v44 = vmul.f32 %v42, 1.442695
    %v45 = vpow.pop %v44
    %v46 = vmul.f32 %v43, 1.442695
    %v47 = vpow.pop %v46
    %v48 = vsel %vm31, %v45, 0.0
    %v49 = vsel %vm33, %v47, 0.0
    %v50 = vadd.f32 %v48, %v49
    %v51 = vrot.slane %v50, 4
    %v52 = vadd.f32 %v50, %v51
    %v53 = vrot.slane %v52, 2
    %v54 = vadd.f32 %v52, %v53
    %v55 = vrot.slane %v54, 1
    %v56 = vadd.f32 %v54, %v55
    %v57 = vlaneseq
    %v58 = vshrl.u32 %v57, 7
    %v59 = vadd.s32 %v58, 8
    %v60 = vlaneseq
    %v61 = vshrl.u32 %v60, 7
    %v62 = vsub.s32 0, %v61
    %v63 = vrot.slane %v30, %v62
    %vm64 = vcmp.eq.s32.totalorder %v58, %v63
    %vm65 = vcmp.eq.s32.totalorder %v59, %v63
    %v66 = vsel %vm64, %v45, 0.0
    %v67 = vsel %vm65, %v47, 0.0
    %v68 = vsel %vm31, %v66, 0.0
    %v69 = vsel %vm33, %v67, 0.0
    %v70 = vadd.f32 %v68, %v69
    %v71 = vrot.slane %v70, 4
    %v72 = vadd.f32 %v70, %v71
    %v73 = vrot.slane %v72, 2
    %v74 = vadd.f32 %v72, %v73
    %v75 = vrot.slane %v74, 1
    %v76 = vadd.f32 %v74, %v75
    %v77 = vrcp.pop %v56
    %v78 = vmul.f32 %v76, %v77
    %v79 = vadd.f32 %v78, 1.0
    %v80 = vmul.f32 %v79, %v79
    %v81 = vsub.f32 4.0, %v80
    %v82 = vrcp.pop 2.0
    %v83 = vmul.f32 %v81, %v82
    %vm84 = vcmask 90112
    %v85 = vsel %vm84, %v83, 0.0
    %86 = vadd.xlane.f32.xlu0 %v85
    %v87 = vpop.xlane.xlu0 %86
    %v88 = vrot.slane %v87, 4
    %v89 = vadd.f32 %v87, %v88
    %v90 = vrot.slane %v89, 2
    %v91 = vadd.f32 %v89, %v90
    %v92 = vrot.slane %v91, 1
    %v93 = vadd.f32 %v91, %v92
    %s94 = vtos %v93
    %v95 = vstv %s94
    %96 = vst [vmem:[#allocation7] sm:$0x1] %v95
    // Predicated region
    $region14: #{tpu_custom_call.1} parent=1 // pred_check
      _
    $region15: #{tpu_custom_call.1} parent=1 // pred_check_branch
      %98 = sbr.rel (0) target = $region17
    $region16: #{tpu_custom_call.1} parent=1 // pred_region
      %s100 = ssub.s32 16, 16
      %101 = vsyncadd [#allocation6], %s100
      %s103 = sshll.u32 [#allocation7], 4
      %s104 = int_to_ptr.vmem [resolvable:$true] %s103
      %106 = dma.vmem_to_hbm [thread:$0]  %s104, 16, %s3, [#allocation6]
    $region17: #{tpu_custom_call.1} parent=1 // pred_fallthru
      _
    // Predicated region
    $region18: #{tpu_custom_call.1} parent=1 // pred_check
      _
    $region19: #{tpu_custom_call.1} parent=1 // pred_check_branch
      %108 = sbr.rel (0) target = $region21
    $region20: #{tpu_custom_call.1} parent=1 // pred_region
      %109 = dma.done [#allocation6], 16
    $region21: #{tpu_custom_call.1} parent=1 // pred_fallthru
      _
    %110 = vsyncpa [#allocation5], 1
    %111 = vsyncpa [#allocation6], 1

</llo_original>
